<compile_context>
chip_gen: v5e
topology: v5e:2x2
jax: 0.10.0
libtpu: 0.0.40
codegen_flags: <defaults>
</compile_context>

<pallas_src>
from functools import lru_cache

import numpy as np
import jax
import jax.numpy as jnp
from jax import lax
from jax.experimental import pallas as pl
from jax.experimental.pallas import tpu as pltpu

EPS = 1e-5
DILATIONS = (1, 2, 4)
LANE = 128

# SMEM scalar-parameter layout (all f32)
IDX_BDIL = 0     # conv_D12/13/14 biases                    (3)
IDX_BN1G = 3     # bn_D11 gamma                             (3)
IDX_BN1B = 6     # bn_D11 beta                               (3)
IDX_B2 = 9       # folded conv_D1D / conv_D1P bias          (1)
IDX_BN3G = 10    # bn_D13 gamma                             (1)
IDX_BN3B = 11    # bn_D13 beta                              (1)
N_SCALARS = 12

# Use the fused single-call path when (x in + x out + folded matrices) fits well inside
# every target generation's VMEM (v7x physical is 64 MiB).
FUSED_VMEM_BUDGET = 24 << 20


# --------------------------------------------------------------------------- wrapper-side
@lru_cache(maxsize=None)
def _tap_basis(T, C, d, ki, kj):
    """Static (TC, TC) 0/1 matrix for one tap of a dilated 3x3 conv over the (T, C) plane.

    basis[dst, src] = 1 iff src = (t + (ki-1)d)*C + (c + (kj-1)d) lies inside the plane
    for dst = t*C + c (zero padding otherwise).  Built per-tap to avoid materializing a
    (3, 3, TC, TC) stack on the host.
    """
    dt, dc = (ki - 1) * d, (kj - 1) * d
    t = np.arange(T); ts = t + dt
    c = np.arange(C); cs = c + dc
    mt = np.zeros((T, T), np.float32)
    ok = (ts >= 0) & (ts < T)
    mt[t[ok], ts[ok]] = 1.0
    mc = np.zeros((C, C), np.float32)
    ok = (cs >= 0) & (cs < C)
    mc[c[ok], cs[ok]] = 1.0
    return np.kron(mt, mc)


def _fold_plane_conv(w33, T, C, d):
    """Fold runtime (3, 3) conv weights against the static tap bases -> dense (TC, TC)."""
    acc = None
    for ki in range(3):
        for kj in range(3):
            b = _tap_basis(T, C, d, ki, kj)
            if not b.any():
                continue
            term = w33[ki, kj] * jnp.asarray(b)
            acc = term if acc is None else acc + term
    return acc


def _fold_conv_matrices(T, C, p):
    # TODO(synk): once 24*TC^2 bytes rivals the 4*TC*WH stream of x (or approaches the
    # scoped VMEM limit), switch the attend tail to a 9-tap pltpu.roll formulation —
    # O(TC) memory — instead of these dense folds.
    m1 = jnp.stack([_fold_plane_conv(p["w_dil"][k], T, C, d)
                    for k, d in enumerate(DILATIONS)])
    m2 = jnp.stack([p["w_pt"][k] * _fold_plane_conv(p["w_dw_mid"][k], T, C, 1)
                    for k in range(3)])
    return m1, m2                                   # each (3, TC, TC)


def _pick_wh_tile(WH, TC):
    """Lane-dense tile width: biggest 128-multiple keeping >= 4 steps (2 per v7x core)."""
    if WH <= 128:
        return WH                                   # full-dim block is always legal
    cap = max(128, ((4 << 20) // (8 * TC)) // 128 * 128)   # x double-buffer <= ~4 MiB
    for t in (2048, 1024, 512, 256, 128):
        if t <= cap and WH >= 4 * t:
            return t
    for t in (2048, 1024, 512, 256, 128):           # small WH: biggest tile that fits
        if t <= cap and WH >= t:
            return t
    return 128


def _vmem_limit(nbytes):
    """Explicit scoped-VMEM request: 2x estimate + headroom, floored/capped safely."""
    return int(min(max(2 * nbytes + (2 << 20), 16 << 20), 60 << 20))


# --------------------------------------------------------------------------- kernel math
def _elu(v):
    return jnp.where(v > 0, v, jnp.exp(jnp.minimum(v, 0.0)) - 1.0)


def _attend_stack(p_ref, m_col, m1_ref, m2_ref, TC):
    """conv/BN/ELU/sigmoid attention tail over the (TC,) joint-mean vector.

    The vector is lane-replicated to (TC, 128) so every folded conv is a native
    (TC, TC) @ (TC, 128) MXU matmul; all lanes carry identical values so the final
    collapse is a static first-lane slice (no cross-lane reduce).
    """
    inv_TC = 1.0 / TC
    m_rep = jnp.broadcast_to(m_col, (TC, LANE))

    def bn(v, gamma, beta):
        # training-mode BatchNorm over the TC joint positions (biased variance)
        mu = jnp.sum(v, axis=0, keepdims=True) * inv_TC
        dv = v - mu
        var = jnp.sum(dv * dv, axis=0, keepdims=True) * inv_TC
        return gamma * dv * lax.rsqrt(var + EPS) + beta

    v = None
    for k in range(3):
        # conv_D12/13/14 (dilated 3x3 over the (T, C) plane), folded -> MXU
        y = jnp.dot(m1_ref[k], m_rep, preferred_element_type=jnp.float32)
        y = y + p_ref[IDX_BDIL + k]
        z = _elu(bn(y, p_ref[IDX_BN1G + k], p_ref[IDX_BN1B + k]))
        # conv_D1D (depthwise 3x3, middle depth tap) with conv_D1P weight pre-folded
        u = jnp.dot(m2_ref[k], z, preferred_element_type=jnp.float32)
        v = u if v is None else v + u
    v = bn(v + p_ref[IDX_B2], p_ref[IDX_BN3G], p_ref[IDX_BN3B])
    s_rep = 1.0 / (1.0 + jnp.exp(-_elu(v)))         # (TC, 128), lanes identical
    return s_rep[:, 0:1]                            # exact first-lane slice -> (TC, 1)


# --------------------------------------------------------------------------- kernels
def _make_reduce_kernel(WH, wht):
    need_mask = (WH % wht) != 0

    def kernel(x_ref, part_ref):
        xv = x_ref[...]                             # (TC, wht)
        if need_mask:
            lane = lax.broadcasted_iota(jnp.int32, xv.shape, 1)
            xv = jnp.where(pl.program_id(0) * wht + lane < WH, xv, 0.0)
        part_ref[...] = jnp.sum(xv, axis=1, keepdims=True)[None]   # (1, TC, 1)

    return kernel


def _make_attend_kernel(TC, WH):
    def kernel(p_ref, part_ref, m1_ref, m2_ref, s_ref):
        m_col = jnp.sum(part_ref[...], axis=0) * (1.0 / WH)        # (TC, 1) spatial mean
        s_ref[...] = _attend_stack(p_ref, m_col, m1_ref, m2_ref, TC)

    return kernel


def _gate_kernel(x_ref, s_ref, o_ref):
    # out[t*C+c, hw] = x[t*C+c, hw] * s[t*C+c]  (lane-dense tiles, row-broadcast gate)
    o_ref[...] = x_ref[...] * s_ref[...]


def _make_fused_kernel(TC, WH):
    def kernel(p_ref, x_ref, m1_ref, m2_ref, o_ref):
        m_col = jnp.sum(x_ref[...], axis=1, keepdims=True) * (1.0 / WH)
        s_col = _attend_stack(p_ref, m_col, m1_ref, m2_ref, TC)
        o_ref[...] = x_ref[...] * s_col

    return kernel


# --------------------------------------------------------------------------- forward
def ctja_forward(x, params, fused=None):
    n, T, C, H, W = x.shape
    assert n == 1, "CTJA forward assumes batch size 1 (as in the PyTorch module)"
    TC, WH = T * C, H * W
    x2 = x.reshape(TC, WH).astype(jnp.float32)      # rows = joint (t, c), lanes = (h, w)

    m1, m2 = _fold_conv_matrices(T, C, params)
    b2 = jnp.sum(params["w_pt"] * params["b_dw"]) + params["b_pt"][0]
    p_scal = jnp.concatenate([
        params["b_dil"], params["bn1_g"], params["bn1_b"],
        jnp.reshape(b2, (1,)), params["bn3_g"], params["bn3_b"],
    ]).astype(jnp.float32)
    assert p_scal.shape == (N_SCALARS,)

    x_bytes = TC * WH * 4
    mat_bytes = 2 * 3 * TC * TC * 4
    if fused is None:
        fused = (2 * x_bytes + mat_bytes) <= FUSED_VMEM_BUDGET

    vmem_sp = pl.BlockSpec(memory_space=pltpu.MemorySpace.VMEM)
    smem_sp = pl.BlockSpec(memory_space=pltpu.MemorySpace.SMEM)

    if fused:
        # Single call: x stays VMEM-resident between the reduce and the gate, so it is
        # read from HBM once and written once (2x traffic vs. the tiled path's 3x).
        out2 = pl.pallas_call(
            _make_fused_kernel(TC, WH),
            out_shape=jax.ShapeDtypeStruct((TC, WH), jnp.float32),
            in_specs=[smem_sp, vmem_sp, vmem_sp, vmem_sp],
            out_specs=vmem_sp,
            compiler_params=pltpu.CompilerParams(
                vmem_limit_bytes=_vmem_limit(2 * x_bytes + mat_bytes)),
        )(p_scal, x2, m1, m2)
        return out2.reshape(1, T, C, H, W)

    # --------- tiled three-call path (x too large to keep resident in VMEM) ----------
    wht = _pick_wh_tile(WH, TC)
    n_wh = pl.cdiv(WH, wht)

    # Phase 1a: lane-tiled spatial partial sums.  Each grid step writes its own partial
    # block, so the axis is "parallel" (shards the x read across both v7x TensorCores).
    partial = pl.pallas_call(
        _make_reduce_kernel(WH, wht),
        out_shape=jax.ShapeDtypeStruct((n_wh, TC, 1), jnp.float32),
        grid=(n_wh,),
        in_specs=[pl.BlockSpec((TC, wht), lambda i: (0, i))],
        out_specs=pl.BlockSpec((1, TC, 1), lambda i: (i, 0, 0)),
        compiler_params=pltpu.CompilerParams(
            dimension_semantics=("parallel",),
            vmem_limit_bytes=_vmem_limit(2 * TC * wht * 4 + 2 * TC * LANE * 4)),
    )(x2)

    # Phase 1b: one-shot attend tail (folded convs on the MXU, BN/ELU/sigmoid).
    # Grid-less, so the (3, TC, TC) matrices are held as a single VMEM copy.
    s_col = pl.pallas_call(
        _make_attend_kernel(TC, WH),
        out_shape=jax.ShapeDtypeStruct((TC, 1), jnp.float32),
        in_specs=[smem_sp, vmem_sp, vmem_sp, vmem_sp],
        out_specs=vmem_sp,
        compiler_params=pltpu.CompilerParams(
            vmem_limit_bytes=_vmem_limit(mat_bytes + (n_wh + 2) * TC * LANE * 4)),
    )(p_scal, partial, m1, m2)

    # Phase 2: HBM-bound elementwise gate, sharded across cores.
    out2 = pl.pallas_call(
        _gate_kernel,
        out_shape=jax.ShapeDtypeStruct((TC, WH), jnp.float32),
        grid=(n_wh,),
        in_specs=[
            pl.BlockSpec((TC, wht), lambda i: (0, i)),
            pl.BlockSpec((TC, 1), lambda i: (0, 0)),
        ],
        out_specs=pl.BlockSpec((TC, wht), lambda i: (0, i)),
        compiler_params=pltpu.CompilerParams(
            dimension_semantics=("parallel",),
            vmem_limit_bytes=_vmem_limit(4 * TC * wht * 4 + 2 * TC * LANE * 4)),
    )(x2, s_col)

    return out2.reshape(1, T, C, H, W)


# --------------------------------------------------------------------------- params / ref
def init_params(key):
    """Deterministic synthetic parameters with the shapes declared in CTJA.__init__."""
    ks = jax.random.split(key, 10)
    w_d12_14 = 0.3 * jax.random.normal(ks[0], (3, 1, 1, 1, 3, 3), jnp.float32)  # 3x Conv3d(1,1,(1,3,3))
    b_d12_14 = 0.1 * jax.random.normal(ks[1], (3,), jnp.float32)
    w_d1d = 0.3 * jax.random.normal(ks[2], (3, 1, 3, 3, 3), jnp.float32)        # Conv3d(3,3,(3,3,3),groups=3)
    b_d1d = 0.1 * jax.random.normal(ks[3], (3,), jnp.float32)
    w_d1p = 0.3 * jax.random.normal(ks[4], (1, 3, 1, 1, 1), jnp.float32)        # Conv3d(3,1,(1,1,1))
    b_d1p = 0.1 * jax.random.normal(ks[5], (1,), jnp.float32)
    return dict(
        w_dil=w_d12_14[:, 0, 0, 0],        # (3, 3, 3) per-dilation 3x3 kernels
        b_dil=b_d12_14,                    # (3,)
        w_dw_mid=w_d1d[:, 0, 1],           # (3, 3, 3): middle depth slice (only live taps)
        b_dw=b_d1d,                        # (3,)
        w_pt=w_d1p[0, :, 0, 0, 0],         # (3,)
        b_pt=b_d1p,                        # (1,)
        bn1_g=1.0 + 0.1 * jax.random.normal(ks[6], (3,), jnp.float32),
        bn1_b=0.1 * jax.random.normal(ks[7], (3,), jnp.float32),
        bn3_g=1.0 + 0.1 * jax.random.normal(ks[8], (1,), jnp.float32),
        bn3_b=0.1 * jax.random.normal(ks[9], (1,), jnp.float32),
    )


def ctja_reference(x, p):
    """Pure-JAX reference mirroring the PyTorch forward (training-mode BatchNorm)."""
    _, T, C, H, W = x.shape
    hp = lax.Precision.HIGHEST
    m = jnp.mean(x, axis=(3, 4))[0]                    # (T, C)
    m4 = m.reshape(1, 1, T, C)                         # NCHW with H=T, W=C
    ys = []
    for k, d in enumerate(DILATIONS):
        w4 = p["w_dil"][k].reshape(1, 1, 3, 3)
        y = lax.conv_general_dilated(m4, w4, (1, 1), [(d, d), (d, d)],
                                     rhs_dilation=(d, d),
                                     dimension_numbers=("NCHW", "OIHW", "NCHW"),
                                     precision=hp)
        ys.append(y[:, 0] + p["b_dil"][k])
    xs = jnp.stack(ys, axis=1)                         # (1, 3, T, C)
    mu = jnp.mean(xs, axis=(0, 2, 3), keepdims=True)
    var = jnp.mean((xs - mu) ** 2, axis=(0, 2, 3), keepdims=True)
    xs = (p["bn1_g"].reshape(1, 3, 1, 1) * (xs - mu) / jnp.sqrt(var + EPS)
          + p["bn1_b"].reshape(1, 3, 1, 1))
    xs = jax.nn.elu(xs)
    wd = p["w_dw_mid"].reshape(3, 1, 3, 3)
    u = lax.conv_general_dilated(xs, wd, (1, 1), [(1, 1), (1, 1)],
                                 dimension_numbers=("NCHW", "OIHW", "NCHW"),
                                 feature_group_count=3, precision=hp)
    u = u + p["b_dw"].reshape(1, 3, 1, 1)
    v = jnp.sum(p["w_pt"].reshape(1, 3, 1, 1) * u, axis=1, keepdims=True) + p["b_pt"][0]
    mu3 = jnp.mean(v)
    var3 = jnp.mean((v - mu3) ** 2)
    v = p["bn3_g"][0] * (v - mu3) / jnp.sqrt(var3 + EPS) + p["bn3_b"][0]
    s = jax.nn.sigmoid(jax.nn.elu(v))                  # (1, 1, T, C)
    return x * s[0, 0].reshape(1, T, C, 1, 1)


if __name__ == "__main__":
    key = jax.random.PRNGKey(0)
    k_x, k_p = jax.random.split(key)
    params = init_params(k_p)
    fwd = jax.jit(ctja_forward, static_argnames=("fused",))

    # Configs exercise: single-tile reduce (WH=256), multi-step parallel reduce + gate
    # (WH=1024 -> four 256-lane tiles), and a non-128-multiple WH (=300) hitting the
    # masked last tile.  Each config runs both the fused and the tiled path.
    for (T, C, H, W) in ((4, 8, 16, 16), (2, 16, 32, 32), (4, 8, 12, 25)):
        x = jax.random.normal(jax.random.fold_in(k_x, H * W), (1, T, C, H, W), jnp.float32)
        ref = ctja_reference(x, params)
        for fused in (True, False):
            out = jax.block_until_ready(fwd(x, params, fused=fused))
            assert out.shape == x.shape
            max_err = float(jnp.max(jnp.abs(out - ref)))
            assert max_err < 5e-4, \
                f"kernel/reference mismatch at {(T, C, H, W)} fused={fused}: {max_err}"

    print("KERNEL_OK")
</pallas_src>

<mosaic_0001>
module attributes {stable_mosaic.version = 11 : i64} {
  func.func @kernel(%arg0: memref<12xf32, #tpu.memory_space<smem>>, %arg1: memref<32x256xf32, #tpu.memory_space<vmem>>, %arg2: memref<3x32x32xf32, #tpu.memory_space<vmem>>, %arg3: memref<3x32x32xf32, #tpu.memory_space<vmem>>, %arg4: memref<32x256xf32, #tpu.memory_space<vmem>>) attributes {dimension_semantics = [], scalar_prefetch = 0 : i64, scratch_operands = 0 : i64, tpu.core_type = #tpu.core_type<tc>} {
    %c0 = arith.constant 0 : index
    %c0_0 = arith.constant 0 : index
    %0 = vector.load %arg1[%c0, %c0_0] : memref<32x256xf32, #tpu.memory_space<vmem>>, vector<32x256xf32>
    %cst = arith.constant dense<0.000000e+00> : vector<32xf32>
    %1 = vector.multi_reduction <add>, %0, %cst [1] : vector<32x256xf32> to vector<32xf32>
    %2 = vector.shape_cast %1 : vector<32xf32> to vector<32x1xf32>
    %cst_1 = arith.constant 3.906250e-03 : f32
    %3 = vector.broadcast %cst_1 : f32 to vector<32x1xf32>
    %4 = arith.mulf %2, %3 : vector<32x1xf32>
    %5 = vector.shape_cast %4 : vector<32x1xf32> to vector<32x1xf32>
    %6 = vector.broadcast %5 : vector<32x1xf32> to vector<32x128xf32>
    %c0_2 = arith.constant 0 : index
    %c0_3 = arith.constant 0 : index
    %c0_4 = arith.constant 0 : index
    %7 = vector.load %arg2[%c0_2, %c0_3, %c0_4] : memref<3x32x32xf32, #tpu.memory_space<vmem>>, vector<1x32x32xf32>
    %8 = vector.shape_cast %7 : vector<1x32x32xf32> to vector<32x32xf32>
    %cst_5 = arith.constant dense<0.000000e+00> : vector<32x128xf32>
    %9 = tpu.matmul %8, %6, %cst_5 {dimension_numbers = #tpu.dot_dimension_numbers<[1], [0], [0], [1], [0, 0, 1, 1], [], []>} : vector<32x32xf32>, vector<32x128xf32>, vector<32x128xf32> -> vector<32x128xf32>
    %c0_6 = arith.constant 0 : index
    %10 = memref.load %arg0[%c0_6] : memref<12xf32, #tpu.memory_space<smem>>
    %11 = vector.broadcast %10 : f32 to vector<32x128xf32>
    %12 = arith.addf %9, %11 : vector<32x128xf32>
    %c3 = arith.constant 3 : index
    %13 = memref.load %arg0[%c3] : memref<12xf32, #tpu.memory_space<smem>>
    %c6 = arith.constant 6 : index
    %14 = memref.load %arg0[%c6] : memref<12xf32, #tpu.memory_space<smem>>
    %cst_7 = arith.constant dense<0.000000e+00> : vector<128xf32>
    %15 = vector.multi_reduction <add>, %12, %cst_7 [0] : vector<32x128xf32> to vector<128xf32>
    %16 = vector.shape_cast %15 : vector<128xf32> to vector<1x128xf32>
    %cst_8 = arith.constant 3.125000e-02 : f32
    %17 = vector.broadcast %cst_8 : f32 to vector<1x128xf32>
    %18 = arith.mulf %16, %17 : vector<1x128xf32>
    %19 = vector.broadcast %18 : vector<1x128xf32> to vector<32x128xf32>
    %20 = arith.subf %12, %19 : vector<32x128xf32>
    %21 = arith.mulf %20, %20 : vector<32x128xf32>
    %cst_9 = arith.constant dense<0.000000e+00> : vector<128xf32>
    %22 = vector.multi_reduction <add>, %21, %cst_9 [0] : vector<32x128xf32> to vector<128xf32>
    %23 = vector.shape_cast %22 : vector<128xf32> to vector<1x128xf32>
    %cst_10 = arith.constant 3.125000e-02 : f32
    %24 = vector.broadcast %cst_10 : f32 to vector<1x128xf32>
    %25 = arith.mulf %23, %24 : vector<1x128xf32>
    %26 = vector.broadcast %13 : f32 to vector<32x128xf32>
    %27 = arith.mulf %26, %20 : vector<32x128xf32>
    %cst_11 = arith.constant 9.99999974E-6 : f32
    %28 = vector.broadcast %cst_11 : f32 to vector<1x128xf32>
    %29 = arith.addf %25, %28 : vector<1x128xf32>
    %30 = math.rsqrt %29 : vector<1x128xf32>
    %31 = vector.broadcast %30 : vector<1x128xf32> to vector<32x128xf32>
    %32 = arith.mulf %27, %31 : vector<32x128xf32>
    %33 = vector.broadcast %14 : f32 to vector<32x128xf32>
    %34 = arith.addf %32, %33 : vector<32x128xf32>
    %cst_12 = arith.constant 0.000000e+00 : f32
    %35 = vector.broadcast %cst_12 : f32 to vector<32x128xf32>
    %36 = arith.cmpf ogt, %34, %35 : vector<32x128xf32>
    %cst_13 = arith.constant 0.000000e+00 : f32
    %37 = vector.broadcast %cst_13 : f32 to vector<32x128xf32>
    %38 = arith.minimumf %34, %37 : vector<32x128xf32>
    %39 = math.exp %38 : vector<32x128xf32>
    %cst_14 = arith.constant 1.000000e+00 : f32
    %40 = vector.broadcast %cst_14 : f32 to vector<32x128xf32>
    %41 = arith.subf %39, %40 : vector<32x128xf32>
    %42 = arith.select %36, %34, %41 : vector<32x128xi1>, vector<32x128xf32>
    %c0_15 = arith.constant 0 : index
    %c0_16 = arith.constant 0 : index
    %c0_17 = arith.constant 0 : index
    %43 = vector.load %arg3[%c0_15, %c0_16, %c0_17] : memref<3x32x32xf32, #tpu.memory_space<vmem>>, vector<1x32x32xf32>
    %44 = vector.shape_cast %43 : vector<1x32x32xf32> to vector<32x32xf32>
    %cst_18 = arith.constant dense<0.000000e+00> : vector<32x128xf32>
    %45 = tpu.matmul %44, %42, %cst_18 {dimension_numbers = #tpu.dot_dimension_numbers<[1], [0], [0], [1], [0, 0, 1, 1], [], []>} : vector<32x32xf32>, vector<32x128xf32>, vector<32x128xf32> -> vector<32x128xf32>
    %c1 = arith.constant 1 : index
    %c0_19 = arith.constant 0 : index
    %c0_20 = arith.constant 0 : index
    %46 = vector.load %arg2[%c1, %c0_19, %c0_20] : memref<3x32x32xf32, #tpu.memory_space<vmem>>, vector<1x32x32xf32>
    %47 = vector.shape_cast %46 : vector<1x32x32xf32> to vector<32x32xf32>
    %cst_21 = arith.constant dense<0.000000e+00> : vector<32x128xf32>
    %48 = tpu.matmul %47, %6, %cst_21 {dimension_numbers = #tpu.dot_dimension_numbers<[1], [0], [0], [1], [0, 0, 1, 1], [], []>} : vector<32x32xf32>, vector<32x128xf32>, vector<32x128xf32> -> vector<32x128xf32>
    %c1_22 = arith.constant 1 : index
    %49 = memref.load %arg0[%c1_22] : memref<12xf32, #tpu.memory_space<smem>>
    %50 = vector.broadcast %49 : f32 to vector<32x128xf32>
    %51 = arith.addf %48, %50 : vector<32x128xf32>
    %c4 = arith.constant 4 : index
    %52 = memref.load %arg0[%c4] : memref<12xf32, #tpu.memory_space<smem>>
    %c7 = arith.constant 7 : index
    %53 = memref.load %arg0[%c7] : memref<12xf32, #tpu.memory_space<smem>>
    %cst_23 = arith.constant dense<0.000000e+00> : vector<128xf32>
    %54 = vector.multi_reduction <add>, %51, %cst_23 [0] : vector<32x128xf32> to vector<128xf32>
    %55 = vector.shape_cast %54 : vector<128xf32> to vector<1x128xf32>
    %cst_24 = arith.constant 3.125000e-02 : f32
    %56 = vector.broadcast %cst_24 : f32 to vector<1x128xf32>
    %57 = arith.mulf %55, %56 : vector<1x128xf32>
    %58 = vector.broadcast %57 : vector<1x128xf32> to vector<32x128xf32>
    %59 = arith.subf %51, %58 : vector<32x128xf32>
    %60 = arith.mulf %59, %59 : vector<32x128xf32>
    %cst_25 = arith.constant dense<0.000000e+00> : vector<128xf32>
    %61 = vector.multi_reduction <add>, %60, %cst_25 [0] : vector<32x128xf32> to vector<128xf32>
    %62 = vector.shape_cast %61 : vector<128xf32> to vector<1x128xf32>
    %cst_26 = arith.constant 3.125000e-02 : f32
    %63 = vector.broadcast %cst_26 : f32 to vector<1x128xf32>
    %64 = arith.mulf %62, %63 : vector<1x128xf32>
    %65 = vector.broadcast %52 : f32 to vector<32x128xf32>
    %66 = arith.mulf %65, %59 : vector<32x128xf32>
    %cst_27 = arith.constant 9.99999974E-6 : f32
    %67 = vector.broadcast %cst_27 : f32 to vector<1x128xf32>
    %68 = arith.addf %64, %67 : vector<1x128xf32>
    %69 = math.rsqrt %68 : vector<1x128xf32>
    %70 = vector.broadcast %69 : vector<1x128xf32> to vector<32x128xf32>
    %71 = arith.mulf %66, %70 : vector<32x128xf32>
    %72 = vector.broadcast %53 : f32 to vector<32x128xf32>
    %73 = arith.addf %71, %72 : vector<32x128xf32>
    %cst_28 = arith.constant 0.000000e+00 : f32
    %74 = vector.broadcast %cst_28 : f32 to vector<32x128xf32>
    %75 = arith.cmpf ogt, %73, %74 : vector<32x128xf32>
    %cst_29 = arith.constant 0.000000e+00 : f32
    %76 = vector.broadcast %cst_29 : f32 to vector<32x128xf32>
    %77 = arith.minimumf %73, %76 : vector<32x128xf32>
    %78 = math.exp %77 : vector<32x128xf32>
    %cst_30 = arith.constant 1.000000e+00 : f32
    %79 = vector.broadcast %cst_30 : f32 to vector<32x128xf32>
    %80 = arith.subf %78, %79 : vector<32x128xf32>
    %81 = arith.select %75, %73, %80 : vector<32x128xi1>, vector<32x128xf32>
    %c1_31 = arith.constant 1 : index
    %c0_32 = arith.constant 0 : index
    %c0_33 = arith.constant 0 : index
    %82 = vector.load %arg3[%c1_31, %c0_32, %c0_33] : memref<3x32x32xf32, #tpu.memory_space<vmem>>, vector<1x32x32xf32>
    %83 = vector.shape_cast %82 : vector<1x32x32xf32> to vector<32x32xf32>
    %cst_34 = arith.constant dense<0.000000e+00> : vector<32x128xf32>
    %84 = tpu.matmul %83, %81, %cst_34 {dimension_numbers = #tpu.dot_dimension_numbers<[1], [0], [0], [1], [0, 0, 1, 1], [], []>} : vector<32x32xf32>, vector<32x128xf32>, vector<32x128xf32> -> vector<32x128xf32>
    %85 = arith.addf %45, %84 : vector<32x128xf32>
    %c2 = arith.constant 2 : index
    %c0_35 = arith.constant 0 : index
    %c0_36 = arith.constant 0 : index
    %86 = vector.load %arg2[%c2, %c0_35, %c0_36] : memref<3x32x32xf32, #tpu.memory_space<vmem>>, vector<1x32x32xf32>
    %87 = vector.shape_cast %86 : vector<1x32x32xf32> to vector<32x32xf32>
    %cst_37 = arith.constant dense<0.000000e+00> : vector<32x128xf32>
    %88 = tpu.matmul %87, %6, %cst_37 {dimension_numbers = #tpu.dot_dimension_numbers<[1], [0], [0], [1], [0, 0, 1, 1], [], []>} : vector<32x32xf32>, vector<32x128xf32>, vector<32x128xf32> -> vector<32x128xf32>
    %c2_38 = arith.constant 2 : index
    %89 = memref.load %arg0[%c2_38] : memref<12xf32, #tpu.memory_space<smem>>
    %90 = vector.broadcast %89 : f32 to vector<32x128xf32>
    %91 = arith.addf %88, %90 : vector<32x128xf32>
    %c5 = arith.constant 5 : index
    %92 = memref.load %arg0[%c5] : memref<12xf32, #tpu.memory_space<smem>>
    %c8 = arith.constant 8 : index
    %93 = memref.load %arg0[%c8] : memref<12xf32, #tpu.memory_space<smem>>
    %cst_39 = arith.constant dense<0.000000e+00> : vector<128xf32>
    %94 = vector.multi_reduction <add>, %91, %cst_39 [0] : vector<32x128xf32> to vector<128xf32>
    %95 = vector.shape_cast %94 : vector<128xf32> to vector<1x128xf32>
    %cst_40 = arith.constant 3.125000e-02 : f32
    %96 = vector.broadcast %cst_40 : f32 to vector<1x128xf32>
    %97 = arith.mulf %95, %96 : vector<1x128xf32>
    %98 = vector.broadcast %97 : vector<1x128xf32> to vector<32x128xf32>
    %99 = arith.subf %91, %98 : vector<32x128xf32>
    %100 = arith.mulf %99, %99 : vector<32x128xf32>
    %cst_41 = arith.constant dense<0.000000e+00> : vector<128xf32>
    %101 = vector.multi_reduction <add>, %100, %cst_41 [0] : vector<32x128xf32> to vector<128xf32>
    %102 = vector.shape_cast %101 : vector<128xf32> to vector<1x128xf32>
    %cst_42 = arith.constant 3.125000e-02 : f32
    %103 = vector.broadcast %cst_42 : f32 to vector<1x128xf32>
    %104 = arith.mulf %102, %103 : vector<1x128xf32>
    %105 = vector.broadcast %92 : f32 to vector<32x128xf32>
    %106 = arith.mulf %105, %99 : vector<32x128xf32>
    %cst_43 = arith.constant 9.99999974E-6 : f32
    %107 = vector.broadcast %cst_43 : f32 to vector<1x128xf32>
    %108 = arith.addf %104, %107 : vector<1x128xf32>
    %109 = math.rsqrt %108 : vector<1x128xf32>
    %110 = vector.broadcast %109 : vector<1x128xf32> to vector<32x128xf32>
    %111 = arith.mulf %106, %110 : vector<32x128xf32>
    %112 = vector.broadcast %93 : f32 to vector<32x128xf32>
    %113 = arith.addf %111, %112 : vector<32x128xf32>
    %cst_44 = arith.constant 0.000000e+00 : f32
    %114 = vector.broadcast %cst_44 : f32 to vector<32x128xf32>
    %115 = arith.cmpf ogt, %113, %114 : vector<32x128xf32>
    %cst_45 = arith.constant 0.000000e+00 : f32
    %116 = vector.broadcast %cst_45 : f32 to vector<32x128xf32>
    %117 = arith.minimumf %113, %116 : vector<32x128xf32>
    %118 = math.exp %117 : vector<32x128xf32>
    %cst_46 = arith.constant 1.000000e+00 : f32
    %119 = vector.broadcast %cst_46 : f32 to vector<32x128xf32>
    %120 = arith.subf %118, %119 : vector<32x128xf32>
    %121 = arith.select %115, %113, %120 : vector<32x128xi1>, vector<32x128xf32>
    %c2_47 = arith.constant 2 : index
    %c0_48 = arith.constant 0 : index
    %c0_49 = arith.constant 0 : index
    %122 = vector.load %arg3[%c2_47, %c0_48, %c0_49] : memref<3x32x32xf32, #tpu.memory_space<vmem>>, vector<1x32x32xf32>
    %123 = vector.shape_cast %122 : vector<1x32x32xf32> to vector<32x32xf32>
    %cst_50 = arith.constant dense<0.000000e+00> : vector<32x128xf32>
    %124 = tpu.matmul %123, %121, %cst_50 {dimension_numbers = #tpu.dot_dimension_numbers<[1], [0], [0], [1], [0, 0, 1, 1], [], []>} : vector<32x32xf32>, vector<32x128xf32>, vector<32x128xf32> -> vector<32x128xf32>
    %125 = arith.addf %85, %124 : vector<32x128xf32>
    %c9 = arith.constant 9 : index
    %126 = memref.load %arg0[%c9] : memref<12xf32, #tpu.memory_space<smem>>
    %127 = vector.broadcast %126 : f32 to vector<32x128xf32>
    %128 = arith.addf %125, %127 : vector<32x128xf32>
    %c10 = arith.constant 10 : index
    %129 = memref.load %arg0[%c10] : memref<12xf32, #tpu.memory_space<smem>>
    %c11 = arith.constant 11 : index
    %130 = memref.load %arg0[%c11] : memref<12xf32, #tpu.memory_space<smem>>
    %cst_51 = arith.constant dense<0.000000e+00> : vector<128xf32>
    %131 = vector.multi_reduction <add>, %128, %cst_51 [0] : vector<32x128xf32> to vector<128xf32>
    %132 = vector.shape_cast %131 : vector<128xf32> to vector<1x128xf32>
    %cst_52 = arith.constant 3.125000e-02 : f32
    %133 = vector.broadcast %cst_52 : f32 to vector<1x128xf32>
    %134 = arith.mulf %132, %133 : vector<1x128xf32>
    %135 = vector.broadcast %134 : vector<1x128xf32> to vector<32x128xf32>
    %136 = arith.subf %128, %135 : vector<32x128xf32>
    %137 = arith.mulf %136, %136 : vector<32x128xf32>
    %cst_53 = arith.constant dense<0.000000e+00> : vector<128xf32>
    %138 = vector.multi_reduction <add>, %137, %cst_53 [0] : vector<32x128xf32> to vector<128xf32>
    %139 = vector.shape_cast %138 : vector<128xf32> to vector<1x128xf32>
    %cst_54 = arith.constant 3.125000e-02 : f32
    %140 = vector.broadcast %cst_54 : f32 to vector<1x128xf32>
    %141 = arith.mulf %139, %140 : vector<1x128xf32>
    %142 = vector.broadcast %129 : f32 to vector<32x128xf32>
    %143 = arith.mulf %142, %136 : vector<32x128xf32>
    %cst_55 = arith.constant 9.99999974E-6 : f32
    %144 = vector.broadcast %cst_55 : f32 to vector<1x128xf32>
    %145 = arith.addf %141, %144 : vector<1x128xf32>
    %146 = math.rsqrt %145 : vector<1x128xf32>
    %147 = vector.broadcast %146 : vector<1x128xf32> to vector<32x128xf32>
    %148 = arith.mulf %143, %147 : vector<32x128xf32>
    %149 = vector.broadcast %130 : f32 to vector<32x128xf32>
    %150 = arith.addf %148, %149 : vector<32x128xf32>
    %cst_56 = arith.constant 0.000000e+00 : f32
    %151 = vector.broadcast %cst_56 : f32 to vector<32x128xf32>
    %152 = arith.cmpf ogt, %150, %151 : vector<32x128xf32>
    %cst_57 = arith.constant 0.000000e+00 : f32
    %153 = vector.broadcast %cst_57 : f32 to vector<32x128xf32>
    %154 = arith.minimumf %150, %153 : vector<32x128xf32>
    %155 = math.exp %154 : vector<32x128xf32>
    %cst_58 = arith.constant 1.000000e+00 : f32
    %156 = vector.broadcast %cst_58 : f32 to vector<32x128xf32>
    %157 = arith.subf %155, %156 : vector<32x128xf32>
    %158 = arith.select %152, %150, %157 : vector<32x128xi1>, vector<32x128xf32>
    %cst_59 = arith.constant 0.000000e+00 : f32
    %159 = vector.broadcast %cst_59 : f32 to vector<32x128xf32>
    %160 = arith.subf %159, %158 : vector<32x128xf32>
    %161 = math.exp %160 : vector<32x128xf32>
    %cst_60 = arith.constant 1.000000e+00 : f32
    %162 = vector.broadcast %cst_60 : f32 to vector<32x128xf32>
    %163 = arith.addf %162, %161 : vector<32x128xf32>
    %cst_61 = arith.constant 1.000000e+00 : f32
    %164 = vector.broadcast %cst_61 : f32 to vector<32x128xf32>
    %165 = arith.divf %164, %163 : vector<32x128xf32>
    %166 = vector.extract_strided_slice %165 {offsets = [0, 0], sizes = [32, 1], strides = [1, 1]} : vector<32x128xf32> to vector<32x1xf32>
    %c0_62 = arith.constant 0 : index
    %c0_63 = arith.constant 0 : index
    %167 = vector.load %arg1[%c0_62, %c0_63] : memref<32x256xf32, #tpu.memory_space<vmem>>, vector<32x256xf32>
    %168 = vector.broadcast %166 : vector<32x1xf32> to vector<32x256xf32>
    %169 = arith.mulf %167, %168 : vector<32x256xf32>
    %c0_64 = arith.constant 0 : index
    %c0_65 = arith.constant 0 : index
    %170 = vector.load %arg4[%c0_64, %c0_65] : memref<32x256xf32, #tpu.memory_space<vmem>>, vector<32x256xf32>
    tpu.vector_store %arg4[%c0_64, %c0_65], %169 {strides = array<i32>} : memref<32x256xf32, #tpu.memory_space<vmem>>, vector<32x256xf32>,
    return
  }
}

</mosaic_0001>

<llo_original>
// kernel: ctja_forward.1
$region0: #{ctja_forward.1}
  #allocation0 [shape = 'u32[]', space=smem, size = 0x4, offset = 0x4, fixed_abs, tag = 'smem constant byte address 0x4 - core index']
  #allocation1 [shape = 'u32[72,128]{1,0:T(1,128)}', space=vmem, size = 0x9000, scoped, tag = 'internal scratch']
  %s0 = inlined_call_operand.vmem [shape: f32[12], index: 0, kind: input, shape index: {}]
  %s1 = inlined_call_operand.vmem [shape: f32[32,256], index: 1, kind: input, shape index: {}]
  %s2 = inlined_call_operand.vmem [shape: f32[3,32,32], index: 2, kind: input, shape index: {}]
  %s3 = inlined_call_operand.vmem [shape: f32[3,32,32], index: 3, kind: input, shape index: {}]
  %s4 = inlined_call_operand.vmem [shape: f32[32,256], index: 4, kind: output, shape index: {}]
  %s5 = sld [smem:[#allocation0]]
  $region30: #{ctja_forward.1} parent=0
    _
  %s7 = ssub.s32 1, %s5
  %s8 = scalar_select 0, %s7, %s5
  $region1: #{ctja_forward.1} parent=0
    #allocation2 [shape = 'u8[512]{0}', space=smem, size = 0x200, scoped, tag = 'input window, operand 0, single buffered']
    #allocation3 [shape = 's32[1]{0}', space=sflag, size = 0x4, scoped, tag = 'scoped memory for ctja_forward.1']
    %9 = vsyncpa [#allocation3], 0
    // Predicated region
    $region2: #{ctja_forward.1} parent=1 // pred_check
      _
    $region3: #{ctja_forward.1} parent=1 // pred_check_branch
      %11 = sbr.rel (0) target = $region5
    $region4: #{ctja_forward.1} parent=1 // pred_region
      %13 = vsyncadd [#allocation3], 0
      %s15 = sshll.u32 %s0, 4
      %s16 = int_to_ptr.vmem [resolvable:$true] %s15
      %18 = dma.vmem_to_smem %s16, 16, [#allocation2], [#allocation3]
    $region5: #{ctja_forward.1} parent=1 // pred_fallthru
      _
    // Predicated region
    $region6: #{ctja_forward.1} parent=1 // pred_check
      _
    $region7: #{ctja_forward.1} parent=1 // pred_check_branch
      %20 = sbr.rel (0) target = $region9
    $region8: #{ctja_forward.1} parent=1 // pred_region
      _
    $region9: #{ctja_forward.1} parent=1 // pred_fallthru
      _
    // Predicated region
    $region10: #{ctja_forward.1} parent=1 // pred_check
      _
    $region11: #{ctja_forward.1} parent=1 // pred_check_branch
      %22 = sbr.rel (0) target = $region13
    $region12: #{ctja_forward.1} parent=1 // pred_region
      _
    $region13: #{ctja_forward.1} parent=1 // pred_fallthru
      _
    // Predicated region
    $region14: #{ctja_forward.1} parent=1 // pred_check
      _
    $region15: #{ctja_forward.1} parent=1 // pred_check_branch
      %24 = sbr.rel (0) target = $region17
    $region16: #{ctja_forward.1} parent=1 // pred_region
      _
    $region17: #{ctja_forward.1} parent=1 // pred_fallthru
      _
    // Predicated region
    $region18: #{ctja_forward.1} parent=1 // pred_check
      _
    $region19: #{ctja_forward.1} parent=1 // pred_check_branch
      %26 = sbr.rel (0) target = $region21
    $region20: #{ctja_forward.1} parent=1 // pred_region
      %28 = dma.done [#allocation3], 16
    $region21: #{ctja_forward.1} parent=1 // pred_fallthru
      _
    %29 = sfence
    %v30 = vld [vmem:[%s1] sm:$0xff]
    %v31 = vld [vmem:[%s1 + $0x8] sm:$0xff]
    %v32 = vld [vmem:[%s1 + $0x10] sm:$0xff]
    %v33 = vld [vmem:[%s1 + $0x18] sm:$0xff]
    %v34 = vld [vmem:[%s1 + $0x20] sm:$0xff]
    %v35 = vld [vmem:[%s1 + $0x28] sm:$0xff]
    %v36 = vld [vmem:[%s1 + $0x30] sm:$0xff]
    %v37 = vld [vmem:[%s1 + $0x38] sm:$0xff]
    %v38 = vadd.f32 %v30, %v31
    %39 = vadd.xlane.f32.xlu0 %v38
    %v40 = vpop.xlane.xlu0 %39
    %v41 = vadd.f32 %v32, %v33
    %42 = vadd.xlane.f32.xlu0 %v41
    %v43 = vpop.xlane.xlu0 %42
    %v44 = vadd.f32 %v34, %v35
    %45 = vadd.xlane.f32.xlu0 %v44
    %v46 = vpop.xlane.xlu0 %45
    %v47 = vadd.f32 %v36, %v37
    %48 = vadd.xlane.f32.xlu0 %v47
    %v49 = vpop.xlane.xlu0 %48
    %v50 = vmul.f32 %v40, 0.00390625
    %v51 = vmul.f32 %v43, 0.00390625
    %v52 = vmul.f32 %v46, 0.00390625
    %v53 = vmul.f32 %v49, 0.00390625
    %v54 = vld [vmem:[%s2] sm:$0xff]
    %v55 = vld [vmem:[%s2 + $0x8] sm:$0xff]
    %v56 = vld [vmem:[%s2 + $0x10] sm:$0xff]
    %v57 = vld [vmem:[%s2 + $0x18] sm:$0xff]
    %s58 = sld [smem:[#allocation2]]
    %v59 = vstv %s58
    %vm60 = vcmask 261120
    %v62 = vsel %vm60, %v54, 0
    %v65 = vsel %vm60, %v55, 0
    %v68 = vsel %vm60, %v56, 0
    %v71 = vsel %vm60, %v57, 0
    %73 = vmatpush.msra.mxu0 0.0
    %74 = vmatpush.msra.mxu0 0.0
    %75 = vmatpush.msra.mxu0 0.0
    %76 = vmatpush.msra.mxu0 0.0
    %77 = vmatpush.msra.mxu0 0.0
    %78 = vmatpush.msra.mxu0 0.0
    %79 = vmatpush.msra.mxu0 0.0
    %80 = vmatpush.msra.mxu0 0.0
    %81 = vmatpush.msra.mxu0 0.0
    %82 = vmatpush.msra.mxu0 0.0
    %83 = vmatpush.msra.mxu0 0.0
    %84 = vmatpush.msra.mxu0 0.0
    %85 = vmatpush.msra.mxu0 %v53
    %86 = vmatpush.msra.mxu0 %v52
    %87 = vmatpush.msra.mxu0 %v51
    %88 = vmatpush.msra.mxu0 %v50
    %89 = vmatmul.f32.gmra.mxu0 %v62
    %v90 = vpop.f32.mrf.mxu0
    %v91 = vadd.f32 %v59, %v90
    %92 = vmatmul.f32.gmra.mxu0 %v65
    %v93 = vpop.f32.mrf.mxu0
    %v94 = vadd.f32 %v59, %v93
    %95 = vmatmul.f32.gmra.mxu0 %v68
    %v96 = vpop.f32.mrf.mxu0
    %v97 = vadd.f32 %v59, %v96
    %98 = vmatmul.f32.gmra.mxu0 %v71
    %v99 = vpop.f32.mrf.mxu0
    %v100 = vadd.f32 %v59, %v99
    %101 = vdwg.mxu0
    %s102 = sld [smem:[#allocation2 + $0x3]]
    %s103 = sld [smem:[#allocation2 + $0x6]]
    %v104 = vadd.f32 %v91, %v94
    %v105 = vadd.f32 %v104, %v97
    %v106 = vadd.f32 %v105, %v100
    %v107 = vrot.slane %v106, 4
    %v108 = vadd.f32 %v106, %v107
    %v109 = vrot.slane %v108, 2
    %v110 = vadd.f32 %v108, %v109
    %v111 = vrot.slane %v110, 1
    %v112 = vadd.f32 %v110, %v111
    %v113 = vmul.f32 %v112, 0.03125
    %v114 = vsub.f32 %v91, %v113
    %v115 = vsub.f32 %v94, %v113
    %v116 = vsub.f32 %v97, %v113
    %v117 = vsub.f32 %v100, %v113
    %v118 = vmul.f32 %v114, %v114
    %v119 = vmul.f32 %v115, %v115
    %v120 = vmul.f32 %v116, %v116
    %v121 = vmul.f32 %v117, %v117
    %v122 = vadd.f32 %v118, %v119
    %v123 = vadd.f32 %v122, %v120
    %v124 = vadd.f32 %v123, %v121
    %v125 = vrot.slane %v124, 4
    %v126 = vadd.f32 %v124, %v125
    %v127 = vrot.slane %v126, 2
    %v128 = vadd.f32 %v126, %v127
    %v129 = vrot.slane %v128, 1
    %v130 = vadd.f32 %v128, %v129
    %v131 = vmul.f32 %v130, 0.03125
    %v132 = vstv %s102
    %v133 = vmul.f32 %v132, %v114
    %v134 = vmul.f32 %v132, %v115
    %v135 = vmul.f32 %v132, %v116
    %v136 = vmul.f32 %v132, %v117
    %v137 = vadd.f32 %v131, 1e-05
    %v138 = vrsqrt.pop %v137
    %v139 = vmul.f32 %v138, %v137
    %v140 = vmul.f32 %v139, %v138
    %v141 = vmul.f32 0.5, %v140
    %v142 = vsub.f32 1.5, %v141
    %v143 = vmul.f32 %v138, %v142
    %vm144 = vweird.f32 %v137
    %vm145 = vweird.f32 %v138
    %vm146 = vmor %vm144, %vm145
    %v147 = vsel %vm146, %v138, %v143
    %v148 = vmul.f32 %v133, %v147
    %v149 = vmul.f32 %v134, %v147
    %v150 = vmul.f32 %v135, %v147
    %v151 = vmul.f32 %v136, %v147
    %v152 = vstv %s103
    %v153 = vadd.f32 %v148, %v152
    %v154 = vadd.f32 %v149, %v152
    %v155 = vadd.f32 %v150, %v152
    %v156 = vadd.f32 %v151, %v152
    %vm157 = vcmp.gt.f32.partialorder %v153, 0.0
    %vm158 = vcmp.gt.f32.partialorder %v154, 0.0
    %vm159 = vcmp.gt.f32.partialorder %v155, 0.0
    %vm160 = vcmp.gt.f32.partialorder %v156, 0.0
    %v161 = vmin.f32 %v153, 0.0
    %v162 = vmin.f32 %v154, 0.0
    %v163 = vmin.f32 %v155, 0.0
    %v164 = vmin.f32 %v156, 0.0
    %v165 = vmul.f32 %v161, 1.442695
    %v166 = vpow.pop %v165
    %v167 = vmul.f32 %v162, 1.442695
    %v168 = vpow.pop %v167
    %v169 = vmul.f32 %v163, 1.442695
    %v170 = vpow.pop %v169
    %v171 = vmul.f32 %v164, 1.442695
    %v172 = vpow.pop %v171
    %v173 = vsub.f32 %v166, 1.0
    %v174 = vsub.f32 %v168, 1.0
    %v175 = vsub.f32 %v170, 1.0
    %v176 = vsub.f32 %v172, 1.0
    %v177 = vsel %vm157, %v153, %v173
    %v178 = vsel %vm158, %v154, %v174
    %v179 = vsel %vm159, %v155, %v175
    %v180 = vsel %vm160, %v156, %v176
    %v181 = vld [vmem:[%s3] sm:$0xff]
    %v182 = vld [vmem:[%s3 + $0x8] sm:$0xff]
    %v183 = vld [vmem:[%s3 + $0x10] sm:$0xff]
    %v184 = vld [vmem:[%s3 + $0x18] sm:$0xff]
    %s185 = scalar_lea.vmem %s2, 32
    %v186 = vld [vmem:[%s185] sm:$0xff]
    %v187 = vld [vmem:[%s185 + $0x8] sm:$0xff]
    %v188 = vld [vmem:[%s185 + $0x10] sm:$0xff]
    %v189 = vld [vmem:[%s185 + $0x18] sm:$0xff]
    %s190 = sld [smem:[#allocation2 + $0x1]]
    %v191 = vstv %s190
    %v193 = vsel %vm60, %v186, 0
    %v196 = vsel %vm60, %v187, 0
    %v199 = vsel %vm60, %v188, 0
    %v202 = vsel %vm60, %v189, 0
    %204 = vmatpush.msra.mxu0 0.0
    %205 = vmatpush.msra.mxu0 0.0
    %206 = vmatpush.msra.mxu0 0.0
    %207 = vmatpush.msra.mxu0 0.0
    %208 = vmatpush.msra.mxu0 0.0
    %209 = vmatpush.msra.mxu0 0.0
    %210 = vmatpush.msra.mxu0 0.0
    %211 = vmatpush.msra.mxu0 0.0
    %212 = vmatpush.msra.mxu0 0.0
    %213 = vmatpush.msra.mxu0 0.0
    %214 = vmatpush.msra.mxu0 0.0
    %215 = vmatpush.msra.mxu0 0.0
    %216 = vmatpush.msra.mxu0 %v53
    %217 = vmatpush.msra.mxu0 %v52
    %218 = vmatpush.msra.mxu0 %v51
    %219 = vmatpush.msra.mxu0 %v50
    %220 = vmatmul.f32.gmra.mxu0 %v193
    %v221 = vpop.f32.mrf.mxu0
    %v222 = vadd.f32 %v191, %v221
    %223 = vmatmul.f32.gmra.mxu0 %v196
    %v224 = vpop.f32.mrf.mxu0
    %v225 = vadd.f32 %v191, %v224
    %226 = vmatmul.f32.gmra.mxu0 %v199
    %v227 = vpop.f32.mrf.mxu0
    %v228 = vadd.f32 %v191, %v227
    %229 = vmatmul.f32.gmra.mxu0 %v202
    %v230 = vpop.f32.mrf.mxu0
    %v231 = vadd.f32 %v191, %v230
    %232 = vdwg.mxu0
    %s233 = sld [smem:[#allocation2 + $0x4]]
    %s234 = sld [smem:[#allocation2 + $0x7]]
    %v235 = vadd.f32 %v222, %v225
    %v236 = vadd.f32 %v235, %v228
    %v237 = vadd.f32 %v236, %v231
    %v238 = vrot.slane %v237, 4
    %v239 = vadd.f32 %v237, %v238
    %v240 = vrot.slane %v239, 2
    %v241 = vadd.f32 %v239, %v240
    %v242 = vrot.slane %v241, 1
    %v243 = vadd.f32 %v241, %v242
    %v244 = vmul.f32 %v243, 0.03125
    %v245 = vsub.f32 %v222, %v244
    %v246 = vsub.f32 %v225, %v244
    %v247 = vsub.f32 %v228, %v244
    %v248 = vsub.f32 %v231, %v244
    %v249 = vmul.f32 %v245, %v245
    %v250 = vmul.f32 %v246, %v246
    %v251 = vmul.f32 %v247, %v247
    %v252 = vmul.f32 %v248, %v248
    %v253 = vadd.f32 %v249, %v250
    %v254 = vadd.f32 %v253, %v251
    %v255 = vadd.f32 %v254, %v252
    %v256 = vrot.slane %v255, 4
    %v257 = vadd.f32 %v255, %v256
    %v258 = vrot.slane %v257, 2
    %v259 = vadd.f32 %v257, %v258
    %v260 = vrot.slane %v259, 1
    %v261 = vadd.f32 %v259, %v260
    %v262 = vmul.f32 %v261, 0.03125
    %v263 = vstv %s233
    %v264 = vmul.f32 %v263, %v245
    %v265 = vmul.f32 %v263, %v246
    %v266 = vmul.f32 %v263, %v247
    %v267 = vmul.f32 %v263, %v248
    %v268 = vadd.f32 %v262, 1e-05
    %v269 = vrsqrt.pop %v268
    %v270 = vmul.f32 %v269, %v268
    %v271 = vmul.f32 %v270, %v269
    %v272 = vmul.f32 0.5, %v271
    %v273 = vsub.f32 1.5, %v272
    %v274 = vmul.f32 %v269, %v273
    %vm275 = vweird.f32 %v268
    %vm276 = vweird.f32 %v269
    %vm277 = vmor %vm275, %vm276
    %v278 = vsel %vm277, %v269, %v274
    %v279 = vmul.f32 %v264, %v278
    %v280 = vmul.f32 %v265, %v278
    %v281 = vmul.f32 %v266, %v278
    %v282 = vmul.f32 %v267, %v278
    %v283 = vstv %s234
    %v284 = vadd.f32 %v279, %v283
    %v285 = vadd.f32 %v280, %v283
    %v286 = vadd.f32 %v281, %v283
    %v287 = vadd.f32 %v282, %v283
    %vm288 = vcmp.gt.f32.partialorder %v284, 0.0
    %vm289 = vcmp.gt.f32.partialorder %v285, 0.0
    %vm290 = vcmp.gt.f32.partialorder %v286, 0.0
    %vm291 = vcmp.gt.f32.partialorder %v287, 0.0
    %v292 = vmin.f32 %v284, 0.0
    %v293 = vmin.f32 %v285, 0.0
    %v294 = vmin.f32 %v286, 0.0
    %v295 = vmin.f32 %v287, 0.0
    %v296 = vmul.f32 %v292, 1.442695
    %v297 = vpow.pop %v296
    %v298 = vmul.f32 %v293, 1.442695
    %v299 = vpow.pop %v298
    %v300 = vmul.f32 %v294, 1.442695
    %v301 = vpow.pop %v300
    %v302 = vmul.f32 %v295, 1.442695
    %v303 = vpow.pop %v302
    %v304 = vsub.f32 %v297, 1.0
    %v305 = vsub.f32 %v299, 1.0
    %v306 = vsub.f32 %v301, 1.0
    %v307 = vsub.f32 %v303, 1.0
    %v308 = vsel %vm288, %v284, %v304
    %v309 = vsel %vm289, %v285, %v305
    %v310 = vsel %vm290, %v286, %v306
    %v311 = vsel %vm291, %v287, %v307
    %s312 = scalar_lea.vmem %s3, 32
    %v313 = vld [vmem:[%s312] sm:$0xff]
    %v314 = vld [vmem:[%s312 + $0x8] sm:$0xff]
    %v315 = vld [vmem:[%s312 + $0x10] sm:$0xff]
    %v316 = vld [vmem:[%s312 + $0x18] sm:$0xff]
    %v318 = vsel %vm60, %v313, 0
    %v321 = vsel %vm60, %v314, 0
    %v324 = vsel %vm60, %v315, 0
    %v327 = vsel %vm60, %v316, 0
    %329 = vmatpush.msra.mxu0 0.0
    %330 = vmatpush.msra.mxu0 0.0
    %331 = vmatpush.msra.mxu0 0.0
    %332 = vmatpush.msra.mxu0 0.0
    %333 = vmatpush.msra.mxu0 0.0
    %334 = vmatpush.msra.mxu0 0.0
    %335 = vmatpush.msra.mxu0 0.0
    %336 = vmatpush.msra.mxu0 0.0
    %337 = vmatpush.msra.mxu0 0.0
    %338 = vmatpush.msra.mxu0 0.0
    %339 = vmatpush.msra.mxu0 0.0
    %340 = vmatpush.msra.mxu0 0.0
    %341 = vmatpush.msra.mxu0 %v311
    %342 = vmatpush.msra.mxu0 %v310
    %343 = vmatpush.msra.mxu0 %v309
    %344 = vmatpush.msra.mxu0 %v308
    %345 = vmatmul.f32.gmra.mxu0 %v318
    %v346 = vpop.f32.mrf.mxu0
    %v347 = vadd.f32 0.0, %v346
    %348 = vmatmul.f32.gmra.mxu0 %v321
    %v349 = vpop.f32.mrf.mxu0
    %v350 = vadd.f32 0.0, %v349
    %351 = vmatmul.f32.gmra.mxu0 %v324
    %v352 = vpop.f32.mrf.mxu0
    %v353 = vadd.f32 0.0, %v352
    %354 = vmatmul.f32.gmra.mxu0 %v327
    %v355 = vpop.f32.mrf.mxu0
    %v356 = vadd.f32 0.0, %v355
    %357 = vdwg.mxu0
    %v359 = vsel %vm60, %v181, 0
    %v362 = vsel %vm60, %v182, 0
    %v365 = vsel %vm60, %v183, 0
    %v368 = vsel %vm60, %v184, 0
    %370 = vmatpush.msra.mxu0 0.0
    %371 = vmatpush.msra.mxu0 0.0
    %372 = vmatpush.msra.mxu0 0.0
    %373 = vmatpush.msra.mxu0 0.0
    %374 = vmatpush.msra.mxu0 0.0
    %375 = vmatpush.msra.mxu0 0.0
    %376 = vmatpush.msra.mxu0 0.0
    %377 = vmatpush.msra.mxu0 0.0
    %378 = vmatpush.msra.mxu0 0.0
    %379 = vmatpush.msra.mxu0 0.0
    %380 = vmatpush.msra.mxu0 0.0
    %381 = vmatpush.msra.mxu0 0.0
    %382 = vmatpush.msra.mxu0 %v180
    %383 = vmatpush.msra.mxu0 %v179
    %384 = vmatpush.msra.mxu0 %v178
    %385 = vmatpush.msra.mxu0 %v177
    %386 = vmatmul.f32.gmra.mxu0 %v359
    %v387 = vpop.f32.mrf.mxu0
    %v388 = vadd.f32 %v347, %v387
    %389 = vmatmul.f32.gmra.mxu0 %v362
    %v390 = vpop.f32.mrf.mxu0
    %v391 = vadd.f32 %v350, %v390
    %392 = vmatmul.f32.gmra.mxu0 %v365
    %v393 = vpop.f32.mrf.mxu0
    %v394 = vadd.f32 %v353, %v393
    %395 = vmatmul.f32.gmra.mxu0 %v368
    %v396 = vpop.f32.mrf.mxu0
    %v397 = vadd.f32 %v356, %v396
    %398 = vdwg.mxu0
    %s399 = scalar_lea.vmem %s2, 64
    %v400 = vld [vmem:[%s399] sm:$0xff]
    %v401 = vld [vmem:[%s399 + $0x8] sm:$0xff]
    %v402 = vld [vmem:[%s399 + $0x10] sm:$0xff]
    %v403 = vld [vmem:[%s399 + $0x18] sm:$0xff]
    %s404 = sld [smem:[#allocation2 + $0x2]]
    %v405 = vstv %s404
    %v407 = vsel %vm60, %v400, 0
    %v410 = vsel %vm60, %v401, 0
    %v413 = vsel %vm60, %v402, 0
    %v416 = vsel %vm60, %v403, 0
    %418 = vmatpush.msra.mxu0 0.0
    %419 = vmatpush.msra.mxu0 0.0
    %420 = vmatpush.msra.mxu0 0.0
    %421 = vmatpush.msra.mxu0 0.0
    %422 = vmatpush.msra.mxu0 0.0
    %423 = vmatpush.msra.mxu0 0.0
    %424 = vmatpush.msra.mxu0 0.0
    %425 = vmatpush.msra.mxu0 0.0
    %426 = vmatpush.msra.mxu0 0.0
    %427 = vmatpush.msra.mxu0 0.0
    %428 = vmatpush.msra.mxu0 0.0
    %429 = vmatpush.msra.mxu0 0.0
    %430 = vmatpush.msra.mxu0 %v53
    %431 = vmatpush.msra.mxu0 %v52
    %432 = vmatpush.msra.mxu0 %v51
    %433 = vmatpush.msra.mxu0 %v50
    %434 = vmatmul.f32.gmra.mxu0 %v407
    %v435 = vpop.f32.mrf.mxu0
    %v436 = vadd.f32 %v405, %v435
    %437 = vmatmul.f32.gmra.mxu0 %v410
    %v438 = vpop.f32.mrf.mxu0
    %v439 = vadd.f32 %v405, %v438
    %440 = vmatmul.f32.gmra.mxu0 %v413
    %v441 = vpop.f32.mrf.mxu0
    %v442 = vadd.f32 %v405, %v441
    %443 = vmatmul.f32.gmra.mxu0 %v416
    %v444 = vpop.f32.mrf.mxu0
    %v445 = vadd.f32 %v405, %v444
    %446 = vdwg.mxu0
    %s447 = sld [smem:[#allocation2 + $0x5]]
    %s448 = sld [smem:[#allocation2 + $0x8]]
    %v449 = vadd.f32 %v436, %v439
    %v450 = vadd.f32 %v449, %v442
    %v451 = vadd.f32 %v450, %v445
    %v452 = vrot.slane %v451, 4
    %v453 = vadd.f32 %v451, %v452
    %v454 = vrot.slane %v453, 2
    %v455 = vadd.f32 %v453, %v454
    %v456 = vrot.slane %v455, 1
    %v457 = vadd.f32 %v455, %v456
    %v458 = vmul.f32 %v457, 0.03125
    %v459 = vsub.f32 %v436, %v458
    %v460 = vsub.f32 %v439, %v458
    %v461 = vsub.f32 %v442, %v458
    %v462 = vsub.f32 %v445, %v458
    %v463 = vmul.f32 %v459, %v459
    %v464 = vmul.f32 %v460, %v460
    %v465 = vmul.f32 %v461, %v461
    %v466 = vmul.f32 %v462, %v462
    %v467 = vadd.f32 %v463, %v464
    %v468 = vadd.f32 %v467, %v465
    %v469 = vadd.f32 %v468, %v466
    %v470 = vrot.slane %v469, 4
    %v471 = vadd.f32 %v469, %v470
    %v472 = vrot.slane %v471, 2
    %v473 = vadd.f32 %v471, %v472
    %v474 = vrot.slane %v473, 1
    %v475 = vadd.f32 %v473, %v474
    %v476 = vmul.f32 %v475, 0.03125
    %v477 = vstv %s447
    %v478 = vmul.f32 %v477, %v459
    %v479 = vmul.f32 %v477, %v460
    %v480 = vmul.f32 %v477, %v461
    %v481 = vmul.f32 %v477, %v462
    %v482 = vadd.f32 %v476, 1e-05
    %v483 = vrsqrt.pop %v482
    %v484 = vmul.f32 %v483, %v482
    %v485 = vmul.f32 %v484, %v483
    %v486 = vmul.f32 0.5, %v485
    %v487 = vsub.f32 1.5, %v486
    %v488 = vmul.f32 %v483, %v487
    %vm489 = vweird.f32 %v482
    %vm490 = vweird.f32 %v483
    %vm491 = vmor %vm489, %vm490
    %v492 = vsel %vm491, %v483, %v488
    %v493 = vmul.f32 %v478, %v492
    %v494 = vmul.f32 %v479, %v492
    %v495 = vmul.f32 %v480, %v492
    %v496 = vmul.f32 %v481, %v492
    %v497 = vstv %s448
    %v498 = vadd.f32 %v493, %v497
    %v499 = vadd.f32 %v494, %v497
    %v500 = vadd.f32 %v495, %v497
    %v501 = vadd.f32 %v496, %v497
    %vm502 = vcmp.gt.f32.partialorder %v498, 0.0
    %vm503 = vcmp.gt.f32.partialorder %v499, 0.0
    %vm504 = vcmp.gt.f32.partialorder %v500, 0.0
    %vm505 = vcmp.gt.f32.partialorder %v501, 0.0
    %v506 = vmin.f32 %v498, 0.0
    %v507 = vmin.f32 %v499, 0.0
    %v508 = vmin.f32 %v500, 0.0
    %v509 = vmin.f32 %v501, 0.0
    %v510 = vmul.f32 %v506, 1.442695
    %v511 = vpow.pop %v510
    %v512 = vmul.f32 %v507, 1.442695
    %v513 = vpow.pop %v512
    %v514 = vmul.f32 %v508, 1.442695
    %v515 = vpow.pop %v514
    %v516 = vmul.f32 %v509, 1.442695
    %v517 = vpow.pop %v516
    %v518 = vsub.f32 %v511, 1.0
    %v519 = vsub.f32 %v513, 1.0
    %v520 = vsub.f32 %v515, 1.0
    %v521 = vsub.f32 %v517, 1.0
    %v522 = vsel %vm502, %v498, %v518
    %v523 = vsel %vm503, %v499, %v519
    %v524 = vsel %vm504, %v500, %v520
    %v525 = vsel %vm505, %v501, %v521
    %s526 = scalar_lea.vmem %s3, 64
    %v527 = vld [vmem:[%s526] sm:$0xff]
    %v528 = vld [vmem:[%s526 + $0x8] sm:$0xff]
    %v529 = vld [vmem:[%s526 + $0x10] sm:$0xff]
    %v530 = vld [vmem:[%s526 + $0x18] sm:$0xff]
    %v532 = vsel %vm60, %v527, 0
    %v535 = vsel %vm60, %v528, 0
    %v538 = vsel %vm60, %v529, 0
    %v541 = vsel %vm60, %v530, 0
    %543 = vmatpush.msra.mxu0 0.0
    %544 = vmatpush.msra.mxu0 0.0
    %545 = vmatpush.msra.mxu0 0.0
    %546 = vmatpush.msra.mxu0 0.0
    %547 = vmatpush.msra.mxu0 0.0
    %548 = vmatpush.msra.mxu0 0.0
    %549 = vmatpush.msra.mxu0 0.0
    %550 = vmatpush.msra.mxu0 0.0
    %551 = vmatpush.msra.mxu0 0.0
    %552 = vmatpush.msra.mxu0 0.0
    %553 = vmatpush.msra.mxu0 0.0
    %554 = vmatpush.msra.mxu0 0.0
    %555 = vmatpush.msra.mxu0 %v525
    %556 = vmatpush.msra.mxu0 %v524
    %557 = vmatpush.msra.mxu0 %v523
    %558 = vmatpush.msra.mxu0 %v522
    %559 = vmatmul.f32.gmra.mxu0 %v532
    %v560 = vpop.f32.mrf.mxu0
    %v561 = vadd.f32 0.0, %v560
    %562 = vmatmul.f32.gmra.mxu0 %v535
    %v563 = vpop.f32.mrf.mxu0
    %v564 = vadd.f32 0.0, %v563
    %565 = vmatmul.f32.gmra.mxu0 %v538
    %v566 = vpop.f32.mrf.mxu0
    %v567 = vadd.f32 0.0, %v566
    %568 = vmatmul.f32.gmra.mxu0 %v541
    %v569 = vpop.f32.mrf.mxu0
    %v570 = vadd.f32 0.0, %v569
    %571 = vdwg.mxu0
    %v572 = vadd.f32 %v388, %v561
    %v573 = vadd.f32 %v391, %v564
    %v574 = vadd.f32 %v394, %v567
    %v575 = vadd.f32 %v397, %v570
    %s576 = sld [smem:[#allocation2 + $0x9]]
    %v577 = vstv %s576
    %v578 = vadd.f32 %v572, %v577
    %v579 = vadd.f32 %v573, %v577
    %v580 = vadd.f32 %v574, %v577
    %v581 = vadd.f32 %v575, %v577
    %s582 = sld [smem:[#allocation2 + $0xa]]
    %s583 = sld [smem:[#allocation2 + $0xb]]
    %v584 = vadd.f32 %v578, %v579
    %v585 = vadd.f32 %v584, %v580
    %v586 = vadd.f32 %v585, %v581
    %v587 = vrot.slane %v586, 4
    %v588 = vadd.f32 %v586, %v587
    %v589 = vrot.slane %v588, 2
    %v590 = vadd.f32 %v588, %v589
    %v591 = vrot.slane %v590, 1
    %v592 = vadd.f32 %v590, %v591
    %v593 = vmul.f32 %v592, 0.03125
    %v594 = vsub.f32 %v578, %v593
    %v595 = vsub.f32 %v579, %v593
    %v596 = vsub.f32 %v580, %v593
    %v597 = vsub.f32 %v581, %v593
    %v598 = vmul.f32 %v594, %v594
    %v599 = vmul.f32 %v595, %v595
    %v600 = vmul.f32 %v596, %v596
    %v601 = vmul.f32 %v597, %v597
    %v602 = vadd.f32 %v598, %v599
    %v603 = vadd.f32 %v602, %v600
    %v604 = vadd.f32 %v603, %v601
    %v605 = vrot.slane %v604, 4
    %v606 = vadd.f32 %v604, %v605
    %v607 = vrot.slane %v606, 2
    %v608 = vadd.f32 %v606, %v607
    %v609 = vrot.slane %v608, 1
    %v610 = vadd.f32 %v608, %v609
    %v611 = vmul.f32 %v610, 0.03125
    %v612 = vstv %s582
    %v613 = vmul.f32 %v612, %v594
    %v614 = vmul.f32 %v612, %v595
    %v615 = vmul.f32 %v612, %v596
    %v616 = vmul.f32 %v612, %v597
    %v617 = vadd.f32 %v611, 1e-05
    %v618 = vrsqrt.pop %v617
    %v619 = vmul.f32 %v618, %v617
    %v620 = vmul.f32 %v619, %v618
    %v621 = vmul.f32 0.5, %v620
    %v622 = vsub.f32 1.5, %v621
    %v623 = vmul.f32 %v618, %v622
    %vm624 = vweird.f32 %v617
    %vm625 = vweird.f32 %v618
    %vm626 = vmor %vm624, %vm625
    %v627 = vsel %vm626, %v618, %v623
    %v628 = vmul.f32 %v613, %v627
    %v629 = vmul.f32 %v614, %v627
    %v630 = vmul.f32 %v615, %v627
    %v631 = vmul.f32 %v616, %v627
    %v632 = vstv %s583
    %v633 = vadd.f32 %v628, %v632
    %v634 = vadd.f32 %v629, %v632
    %v635 = vadd.f32 %v630, %v632
    %v636 = vadd.f32 %v631, %v632
    %vm637 = vcmp.gt.f32.partialorder %v633, 0.0
    %vm638 = vcmp.gt.f32.partialorder %v634, 0.0
    %vm639 = vcmp.gt.f32.partialorder %v635, 0.0
    %vm640 = vcmp.gt.f32.partialorder %v636, 0.0
    %v641 = vmin.f32 %v633, 0.0
    %v642 = vmin.f32 %v634, 0.0
    %v643 = vmin.f32 %v635, 0.0
    %v644 = vmin.f32 %v636, 0.0
    %v645 = vmul.f32 %v641, 1.442695
    %v646 = vpow.pop %v645
    %v647 = vmul.f32 %v642, 1.442695
    %v648 = vpow.pop %v647
    %v649 = vmul.f32 %v643, 1.442695
    %v650 = vpow.pop %v649
    %v651 = vmul.f32 %v644, 1.442695
    %v652 = vpow.pop %v651
    %v653 = vsub.f32 %v646, 1.0
    %v654 = vsub.f32 %v648, 1.0
    %v655 = vsub.f32 %v650, 1.0
    %v656 = vsub.f32 %v652, 1.0
    %v657 = vsel %vm637, %v633, %v653
    %v658 = vsel %vm638, %v634, %v654
    %v659 = vsel %vm639, %v635, %v655
    %v660 = vsel %vm640, %v636, %v656
    %v661 = vsub.f32 0.0, %v657
    %v662 = vsub.f32 0.0, %v658
    %v663 = vsub.f32 0.0, %v659
    %v664 = vsub.f32 0.0, %v660
    %v665 = vmul.f32 %v661, 1.442695
    %v666 = vpow.pop %v665
    %v667 = vmul.f32 %v662, 1.442695
    %v668 = vpow.pop %v667
    %v669 = vmul.f32 %v663, 1.442695
    %v670 = vpow.pop %v669
    %v671 = vmul.f32 %v664, 1.442695
    %v672 = vpow.pop %v671
    %v673 = vadd.f32 %v666, 1.0
    %v674 = vadd.f32 %v668, 1.0
    %v675 = vadd.f32 %v670, 1.0
    %v676 = vadd.f32 %v672, 1.0
    %v677 = vrcp.pop %v673
    %v678 = vmul.f32 %v673, %v677
    %v679 = vsub.f32 1.0, %v678
    %v680 = vmul.f32 %v677, %v679
    %v681 = vadd.f32 %v677, %v680
    %vm682 = vweird.f32 %v673
    %vm683 = vweird.f32 %v677
    %vm684 = vmor %vm682, %vm683
    %v685 = vsel %vm684, %v677, %v681
    %v686 = vand.u32 2147483647, %v673
    %vm687 = vcmp.eq.f32.partialorder %v686, 8.507059e+37
    %v688 = vand.u32 %v673, 2147483648
    %v689 = vor.u32 1.1754944e-38, %v688
    %v690 = vsel %vm687, %v689, %v685
    %v691 = vmul.f32 1.0, %v690
    %v692 = vrcp.pop %v674
    %v693 = vmul.f32 %v674, %v692
    %v694 = vsub.f32 1.0, %v693
    %v695 = vmul.f32 %v692, %v694
    %v696 = vadd.f32 %v692, %v695
    %vm697 = vweird.f32 %v674
    %vm698 = vweird.f32 %v692
    %vm699 = vmor %vm697, %vm698
    %v700 = vsel %vm699, %v692, %v696
    %v701 = vand.u32 2147483647, %v674
    %vm702 = vcmp.eq.f32.partialorder %v701, 8.507059e+37
    %v703 = vand.u32 %v674, 2147483648
    %v704 = vor.u32 1.1754944e-38, %v703
    %v705 = vsel %vm702, %v704, %v700
    %v706 = vmul.f32 1.0, %v705
    %v707 = vrcp.pop %v675
    %v708 = vmul.f32 %v675, %v707
    %v709 = vsub.f32 1.0, %v708
    %v710 = vmul.f32 %v707, %v709
    %v711 = vadd.f32 %v707, %v710
    %vm712 = vweird.f32 %v675
    %vm713 = vweird.f32 %v707
    %vm714 = vmor %vm712, %vm713
    %v715 = vsel %vm714, %v707, %v711
    %v716 = vand.u32 2147483647, %v675
    %vm717 = vcmp.eq.f32.partialorder %v716, 8.507059e+37
    %v718 = vand.u32 %v675, 2147483648
    %v719 = vor.u32 1.1754944e-38, %v718
    %v720 = vsel %vm717, %v719, %v715
    %v721 = vmul.f32 1.0, %v720
    %v722 = vrcp.pop %v676
    %v723 = vmul.f32 %v676, %v722
    %v724 = vsub.f32 1.0, %v723
    %v725 = vmul.f32 %v722, %v724
    %v726 = vadd.f32 %v722, %v725
    %vm727 = vweird.f32 %v676
    %vm728 = vweird.f32 %v722
    %vm729 = vmor %vm727, %vm728
    %v730 = vsel %vm729, %v722, %v726
    %v731 = vand.u32 2147483647, %v676
    %vm732 = vcmp.eq.f32.partialorder %v731, 8.507059e+37
    %v733 = vand.u32 %v676, 2147483648
    %v734 = vor.u32 1.1754944e-38, %v733
    %v735 = vsel %vm732, %v734, %v730
    %v736 = vmul.f32 1.0, %v735
    %738 = vset.pattern.permute.xlu0 0
    %739 = vperm.xlu0 %738, %v691
    %v740 = vpop.permute.xlu0 %739
    %743 = vset.pattern.permute.xlu0 0
    %744 = vperm.xlu0 %743, %v706
    %v745 = vpop.permute.xlu0 %744
    %748 = vset.pattern.permute.xlu0 0
    %749 = vperm.xlu0 %748, %v721
    %v750 = vpop.permute.xlu0 %749
    %753 = vset.pattern.permute.xlu0 0
    %754 = vperm.xlu0 %753, %v736
    %v755 = vpop.permute.xlu0 %754
    %v757 = vmul.f32 %v30, %v740
    %v758 = vmul.f32 %v31, %v740
    %v759 = vmul.f32 %v32, %v745
    %v760 = vmul.f32 %v33, %v745
    %v761 = vmul.f32 %v34, %v750
    %v762 = vmul.f32 %v35, %v750
    %v763 = vmul.f32 %v36, %v755
    %v764 = vmul.f32 %v37, %v755
    %765 = vst [vmem:[%s4] sm:$0xff] %v757
    %766 = vst [vmem:[%s4 + $0x8] sm:$0xff] %v758
    %767 = vst [vmem:[%s4 + $0x10] sm:$0xff] %v759
    %768 = vst [vmem:[%s4 + $0x18] sm:$0xff] %v760
    %769 = vst [vmem:[%s4 + $0x20] sm:$0xff] %v761
    %770 = vst [vmem:[%s4 + $0x28] sm:$0xff] %v762
    %771 = vst [vmem:[%s4 + $0x30] sm:$0xff] %v763
    %772 = vst [vmem:[%s4 + $0x38] sm:$0xff] %v764
    // Predicated region
    $region22: #{ctja_forward.1} parent=1 // pred_check
      _
    $region23: #{ctja_forward.1} parent=1 // pred_check_branch
      %774 = sbr.rel (0) target = $region25
    $region24: #{ctja_forward.1} parent=1 // pred_region
      _
    $region25: #{ctja_forward.1} parent=1 // pred_fallthru
      _
    // Predicated region
    $region26: #{ctja_forward.1} parent=1 // pred_check
      _
    $region27: #{ctja_forward.1} parent=1 // pred_check_branch
      %776 = sbr.rel (0) target = $region29
    $region28: #{ctja_forward.1} parent=1 // pred_region
      _
    $region29: #{ctja_forward.1} parent=1 // pred_fallthru
      _
    %777 = vsyncpa [#allocation3], 1

</llo_original>
